<compile_context>
chip_gen: v7x
topology: tpu7x:2x2x1
jax: 0.10.0
libtpu: 0.0.40
codegen_flags: <defaults>
</compile_context>

<pallas_src>
import functools

import jax
import jax.numpy as jnp
from jax import lax
from jax.experimental import pallas as pl
from jax.experimental.pallas import tpu as pltpu


LN_EPS = 1e-5                 # torch.nn.LayerNorm default eps
DEFAULT_BATCH_BLOCK = 512     # rows per grid step; sweep 512/1024 on v6e/v5e, check VMEM on v7x


def _lattice_cell_kernel(h_ref, hprev_ref, c_ref, cprev_ref, x_ref,
                         w_fc_ref, w_ih_ref, w_hh_ref, vecs_ref, out_ref):
    """Fused LatticeRNNCell step (one batch block).

    h_ref/hprev_ref/c_ref/cprev_ref : [bb, H]   current / previous hidden & cell states
    x_ref    : [bb, I]   input features (already squeezed, f32)
    w_fc_ref : [4H, H]   rows 0:H   = hp_w[:, :H].T   (hidden half of hidden_processor Linear)
                         rows H:2H  = hp_w[:, H:].T    (hidden_prev half)
                         rows 2H:3H = cp_w[:, :H].T    (cell half of cell_processor Linear)
                         rows 3H:4H = cp_w[:, H:].T    (cell_prev half)
    w_ih_ref : [I, 4H]   permuted LSTM input weights  (gate order i, f, o, g)
    w_hh_ref : [H, 4H]   permuted LSTM hidden weights (gate order i, f, o, g)
    vecs_ref : [7, 4H]   rows 0..5: hp_b, hp_gamma, hp_beta, cp_b, cp_gamma, cp_beta
                         (each valid in lanes [0:H]); row 6: (b_ih + b_hh) permuted, [4H]
    out_ref  : [bb, 2H]  lanes 0:H = h_new, lanes H:2H = c_new   (lane-dense single store)
    """
    H = h_ref.shape[-1]
    w_fc = w_fc_ref[...]
    cdt = w_fc.dtype                     # MXU compute dtype (bf16 by default)

    # FC linears as per-operand dots accumulated in f32 (no structural zeros, no concat).
    pre_h = (jnp.dot(h_ref[...].astype(cdt), w_fc[0:H, :],
                     preferred_element_type=jnp.float32)
             + jnp.dot(hprev_ref[...].astype(cdt), w_fc[H:2 * H, :],
                       preferred_element_type=jnp.float32))               # [bb, H] f32
    pre_c = (jnp.dot(c_ref[...].astype(cdt), w_fc[2 * H:3 * H, :],
                     preferred_element_type=jnp.float32)
             + jnp.dot(cprev_ref[...].astype(cdt), w_fc[3 * H:4 * H, :],
                       preferred_element_type=jnp.float32))               # [bb, H] f32

    vecs = vecs_ref[...]                                                  # [7, 4H] f32

    def ln_relu(y, b, gamma, beta):
        # Linear bias + LayerNorm (biased variance, PyTorch semantics) + ReLU, all f32.
        # var = E[y^2] - mu^2 -> the two cross-lane reductions are independent.
        y = y + b
        mu = jnp.mean(y, axis=-1, keepdims=True)
        ms = jnp.mean(y * y, axis=-1, keepdims=True)
        var = jnp.maximum(ms - mu * mu, 0.0)
        y = (y - mu) * lax.rsqrt(var + LN_EPS)
        return jnp.maximum(y * gamma + beta, 0.0)

    processed_h = ln_relu(pre_h, vecs[0:1, 0:H], vecs[1:2, 0:H], vecs[2:3, 0:H])
    processed_c = ln_relu(pre_c, vecs[3:4, 0:H], vecs[4:5, 0:H], vecs[5:6, 0:H])

    # LSTM gate pre-activations in permuted layout [i | f | o | g].
    gates = (jnp.dot(x_ref[...].astype(cdt), w_ih_ref[...],
                     preferred_element_type=jnp.float32)
             + jnp.dot(processed_h.astype(cdt), w_hh_ref[...],
                       preferred_element_type=jnp.float32)
             + vecs[6:7, :])                                              # [bb, 4H] f32

    sig = jax.nn.sigmoid(gates[:, 0:3 * H])   # single EUP launch for i, f, o
    i_g = sig[:, 0:H]
    f_g = sig[:, H:2 * H]
    o_g = sig[:, 2 * H:3 * H]
    g_g = jnp.tanh(gates[:, 3 * H:4 * H])     # single tanh launch for g

    c_new = f_g * processed_c + i_g * g_g
    h_new = o_g * jnp.tanh(c_new)

    # One lane-dense store: [bb, 2H] with h | c packed along lanes.
    out_ref[...] = jnp.concatenate([h_new, c_new], axis=-1).astype(out_ref.dtype)


def prepare_lattice_params(params, input_size, hidden_size, compute_dtype=jnp.bfloat16):
    """One-time parameter preparation (transpose / fuse / permute / pack / cast).

    Done once when the params are created, NOT per forward call, so no per-call HBM traffic
    is spent on weight reshuffling.  MXU weights are cast to `compute_dtype` (bf16 default:
    half the VMEM/DMA bytes, native MXU rate); LayerNorm vectors and folded biases stay f32.
    """
    H, I = hidden_size, input_size
    f32 = jnp.float32

    # Gate permutation: PyTorch order i, f, g, o  ->  i, f, o, g (sigmoid gates contiguous).
    perm = jnp.concatenate([
        jnp.arange(0, H), jnp.arange(H, 2 * H),
        jnp.arange(3 * H, 4 * H), jnp.arange(2 * H, 3 * H)])
    w_ih_p = params["w_ih"][perm, :]                       # [4H, I]
    w_hh_p = params["w_hh"][perm, :]                       # [4H, H]
    bias_p = (params["b_ih"].astype(f32)
              + params["b_hh"].astype(f32))[perm]          # [4H]   (exact fold, f32)

    # FC weights split per operand, stacked on the contraction axis: [4H, H]
    w_fc = jnp.concatenate([
        params["hp_w"][:, 0:H].T, params["hp_w"][:, H:2 * H].T,
        params["cp_w"][:, 0:H].T, params["cp_w"][:, H:2 * H].T,
    ], axis=0).astype(compute_dtype)

    w_ih_t = w_ih_p.T.astype(compute_dtype)                # [I, 4H]
    w_hh_t = w_hh_p.T.astype(compute_dtype)                # [H, 4H]

    def pad_h(v):
        return jnp.pad(v.astype(f32), (0, 3 * H))          # [H] -> [4H]

    vecs = jnp.stack([
        pad_h(params["hp_b"]), pad_h(params["hp_gamma"]), pad_h(params["hp_beta"]),
        pad_h(params["cp_b"]), pad_h(params["cp_gamma"]), pad_h(params["cp_beta"]),
        bias_p,
    ], axis=0)                                             # [7, 4H] f32

    return {"w_fc": w_fc, "w_ih_t": w_ih_t, "w_hh_t": w_hh_t, "vecs": vecs}


@functools.partial(jax.jit, static_argnames=("batch_block", "use_core_parallel"))
def lattice_rnn_cell_forward(x, hidden_states, prepared, *,
                             batch_block=DEFAULT_BATCH_BLOCK,
                             use_core_parallel=False):
    """LatticeRNNCell forward (eval mode).

    x:             [B, 1, I] or [B, I]
    hidden_states: (hidden, cell, hidden_prev, cell_prev), each [B, H]
    prepared:      output of prepare_lattice_params()
    use_core_parallel: set True on v7x (2 TensorCores) to shard the batch grid across cores.
    """
    hidden, cell, hidden_prev, cell_prev = hidden_states
    if x.ndim == 3:
        x = jnp.squeeze(x, axis=1)
    x = x.astype(jnp.float32)

    B, I = x.shape
    H = hidden.shape[-1]

    w_fc = prepared["w_fc"]              # [4H, H]
    w_ih_t = prepared["w_ih_t"]          # [I, 4H]
    w_hh_t = prepared["w_hh_t"]          # [H, 4H]
    vecs = prepared["vecs"]              # [7, 4H]

    # Batch tiling: full-batch block when small (block == full dim is always legal),
    # otherwise batch_block rows per step with a partial last block (no padded-row waste).
    bb = B if B <= batch_block else batch_block
    grid = (pl.cdiv(B, bb),)

    # Explicit scoped-VMEM budget: weights (double-buffered), in/out blocks (double-buffered),
    # plus intermediates, with generous headroom; clamped to [16 MiB, 64 MiB].
    w_item = jnp.dtype(w_fc.dtype).itemsize
    weight_bytes = (4 * H * H + I * 4 * H + H * 4 * H) * w_item + 8 * 4 * H * 4
    block_in_bytes = bb * (4 * H + I) * 4
    block_out_bytes = bb * 2 * H * 4
    scratch_bytes = bb * 12 * H * 4
    est = 2 * weight_bytes + 2 * block_in_bytes + 2 * block_out_bytes + scratch_bytes
    vmem_limit = int(min(64 * 2**20, max(16 * 2**20, 4 * est)))

    sem = (pltpu.CORE_PARALLEL,) if use_core_parallel else ("parallel",)

    cost = pl.CostEstimate(
        flops=2 * B * (8 * H * H + 4 * H * I),
        transcendentals=5 * B * H,
        bytes_accessed=(4 * B * (4 * H + I) + 4 * B * 2 * H
                        + (4 * H * H + I * 4 * H + H * 4 * H) * w_item + 7 * 4 * H * 4),
    )

    out = pl.pallas_call(
        _lattice_cell_kernel,
        out_shape=jax.ShapeDtypeStruct((B, 2 * H), jnp.float32),
        grid=grid,
        in_specs=[
            pl.BlockSpec((bb, H), lambda i: (i, 0)),          # hidden
            pl.BlockSpec((bb, H), lambda i: (i, 0)),          # hidden_prev
            pl.BlockSpec((bb, H), lambda i: (i, 0)),          # cell
            pl.BlockSpec((bb, H), lambda i: (i, 0)),          # cell_prev
            pl.BlockSpec((bb, I), lambda i: (i, 0)),          # x
            pl.BlockSpec((4 * H, H), lambda i: (0, 0)),       # resident FC weights
            pl.BlockSpec((I, 4 * H), lambda i: (0, 0)),       # resident W_ih^T
            pl.BlockSpec((H, 4 * H), lambda i: (0, 0)),       # resident W_hh^T
            pl.BlockSpec((7, 4 * H), lambda i: (0, 0)),       # packed bias/LN vectors
        ],
        out_specs=pl.BlockSpec((bb, 2 * H), lambda i: (i, 0)),
        compiler_params=pltpu.CompilerParams(
            dimension_semantics=sem,
            vmem_limit_bytes=vmem_limit),
        cost_estimate=cost,
    )(hidden, hidden_prev, cell, cell_prev, x, w_fc, w_ih_t, w_hh_t, vecs)

    h_new = out[:, 0:H]
    c_new = out[:, H:2 * H]
    return h_new, c_new


def _reference_forward(x, hidden_states, params, hidden_size, emulate_bf16=False):
    """Pure-JAX reference mirroring the PyTorch module (eval mode), unpermuted params.

    emulate_bf16=True quantizes the matmul operands exactly like the kernel does (bf16
    operands, f32 accumulation) so the kernel's structure can be checked tightly.
    """
    hidden, cell, hidden_prev, cell_prev = hidden_states
    H = hidden_size

    if emulate_bf16:
        q = lambda a: a.astype(jnp.bfloat16).astype(jnp.float32)
    else:
        q = lambda a: a.astype(jnp.float32)

    def fc(inp, w, b, gamma, beta):
        y = q(inp) @ q(w).T + b
        mu = jnp.mean(y, axis=-1, keepdims=True)
        var = jnp.mean((y - mu) ** 2, axis=-1, keepdims=True)
        y = (y - mu) / jnp.sqrt(var + LN_EPS)
        y = y * gamma + beta
        return jax.nn.relu(y)

    ph = fc(jnp.concatenate([hidden, hidden_prev], axis=1),
            params["hp_w"], params["hp_b"], params["hp_gamma"], params["hp_beta"])
    pc = fc(jnp.concatenate([cell, cell_prev], axis=1),
            params["cp_w"], params["cp_b"], params["cp_gamma"], params["cp_beta"])

    xx = jnp.squeeze(x, axis=1).astype(jnp.float32)
    gates = (q(xx) @ q(params["w_ih"]).T + params["b_ih"]
             + q(ph) @ q(params["w_hh"]).T + params["b_hh"])
    i_g = jax.nn.sigmoid(gates[:, 0 * H:1 * H])
    f_g = jax.nn.sigmoid(gates[:, 1 * H:2 * H])
    g_g = jnp.tanh(gates[:, 2 * H:3 * H])
    o_g = jax.nn.sigmoid(gates[:, 3 * H:4 * H])
    c_new = f_g * pc + i_g * g_g
    h_new = o_g * jnp.tanh(c_new)
    return h_new, c_new


def make_params(key, input_size, hidden_size):
    """Deterministic synthetic parameters matching the module's __init__ shapes."""
    ks = jax.random.split(key, 8)
    H, I = hidden_size, input_size
    s = 0.1
    return {
        # hidden_processor: Linear(2H -> H) + LayerNorm(H)
        "hp_w": s * jax.random.normal(ks[0], (H, 2 * H), jnp.float32),
        "hp_b": s * jax.random.normal(ks[1], (H,), jnp.float32),
        "hp_gamma": jnp.ones((H,), jnp.float32),
        "hp_beta": jnp.zeros((H,), jnp.float32),
        # cell_processor: Linear(2H -> H) + LayerNorm(H)
        "cp_w": s * jax.random.normal(ks[2], (H, 2 * H), jnp.float32),
        "cp_b": s * jax.random.normal(ks[3], (H,), jnp.float32),
        "cp_gamma": jnp.ones((H,), jnp.float32),
        "cp_beta": jnp.zeros((H,), jnp.float32),
        # LSTMCell(I, H): W_ih [4H, I], W_hh [4H, H], b_ih/b_hh [4H]
        "w_ih": s * jax.random.normal(ks[4], (4 * H, I), jnp.float32),
        "w_hh": s * jax.random.normal(ks[5], (4 * H, H), jnp.float32),
        "b_ih": s * jax.random.normal(ks[6], (4 * H,), jnp.float32),
        "b_hh": s * jax.random.normal(ks[7], (4 * H,), jnp.float32),
    }


if __name__ == "__main__":
    B, I, H = 8, 16, 32
    key = jax.random.PRNGKey(0)
    k_p, k_x, k_h, k_c, k_hp, k_cp = jax.random.split(key, 6)

    params = make_params(k_p, I, H)
    prepared = prepare_lattice_params(params, I, H)       # one-time prep (bf16 MXU weights)

    x = jax.random.normal(k_x, (B, 1, I), jnp.float32)    # [B, 1, I] -> squeezed inside
    hidden = jax.random.normal(k_h, (B, H), jnp.float32)
    cell = jax.random.normal(k_c, (B, H), jnp.float32)
    hidden_prev = jax.random.normal(k_hp, (B, H), jnp.float32)
    cell_prev = jax.random.normal(k_cp, (B, H), jnp.float32)
    hidden_states = (hidden, cell, hidden_prev, cell_prev)

    h_out, c_out = lattice_rnn_cell_forward(x, hidden_states, prepared)
    jax.block_until_ready((h_out, c_out))

    # Structural check: reference with the same bf16 operand quantization (tight tolerance).
    h_emu, c_emu = _reference_forward(x, hidden_states, params, H, emulate_bf16=True)
    assert jnp.allclose(h_out, h_emu, atol=5e-3, rtol=5e-3), \
        float(jnp.max(jnp.abs(h_out - h_emu)))
    assert jnp.allclose(c_out, c_emu, atol=5e-3, rtol=5e-3), \
        float(jnp.max(jnp.abs(c_out - c_emu)))

    # Fidelity check vs the pure-f32 PyTorch-equivalent reference (bf16 MXU tolerance).
    h_ref, c_ref = _reference_forward(x, hidden_states, params, H)
    assert jnp.allclose(h_out, h_ref, atol=1e-1, rtol=0.0), \
        float(jnp.max(jnp.abs(h_out - h_ref)))
    assert jnp.allclose(c_out, c_ref, atol=1e-1, rtol=0.0), \
        float(jnp.max(jnp.abs(c_out - c_ref)))

    print("KERNEL_OK")
</pallas_src>

<mosaic_0001>
module attributes {stable_mosaic.version = 11 : i64} {
  func.func @_lattice_cell_kernel(%arg0: i32, %arg1: memref<8x32xf32, #tpu.memory_space<vmem>>, %arg2: memref<8x32xf32, #tpu.memory_space<vmem>>, %arg3: memref<8x32xf32, #tpu.memory_space<vmem>>, %arg4: memref<8x32xf32, #tpu.memory_space<vmem>>, %arg5: memref<8x16xf32, #tpu.memory_space<vmem>>, %arg6: memref<128x32xbf16, #tpu.memory_space<vmem>>, %arg7: memref<16x128xbf16, #tpu.memory_space<vmem>>, %arg8: memref<32x128xbf16, #tpu.memory_space<vmem>>, %arg9: memref<7x128xf32, #tpu.memory_space<vmem>>, %arg10: memref<8x64xf32, #tpu.memory_space<vmem>>) attributes {dimension_semantics = [#tpu.dimension_semantics<parallel>], iteration_bounds = array<i64: 1>, scalar_prefetch = 0 : i64, scratch_operands = 0 : i64, tpu.core_type = #tpu.core_type<tc>, window_params = [{transform_indices = @transform_0, window_bounds = array<i64: 8, 32>}, {transform_indices = @transform_1, window_bounds = array<i64: 8, 32>}, {transform_indices = @transform_2, window_bounds = array<i64: 8, 32>}, {transform_indices = @transform_3, window_bounds = array<i64: 8, 32>}, {transform_indices = @transform_4, window_bounds = array<i64: 8, 16>}, {pipeline_mode = #tpu.pipeline_mode<synchronous>, transform_indices = @transform_5, window_bounds = array<i64: 128, 32>}, {pipeline_mode = #tpu.pipeline_mode<synchronous>, transform_indices = @transform_6, window_bounds = array<i64: 16, 128>}, {pipeline_mode = #tpu.pipeline_mode<synchronous>, transform_indices = @transform_7, window_bounds = array<i64: 32, 128>}, {pipeline_mode = #tpu.pipeline_mode<synchronous>, transform_indices = @transform_8, window_bounds = array<i64: 7, 128>}, {transform_indices = @transform_9, window_bounds = array<i64: 8, 64>}]} {
    %c0 = arith.constant 0 : index
    %c0_0 = arith.constant 0 : index
    %0 = vector.load %arg6[%c0, %c0_0] : memref<128x32xbf16, #tpu.memory_space<vmem>>, vector<128x32xbf16>
    %c0_1 = arith.constant 0 : index
    %c0_2 = arith.constant 0 : index
    %1 = vector.load %arg1[%c0_1, %c0_2] : memref<8x32xf32, #tpu.memory_space<vmem>>, vector<8x32xf32>
    %2 = arith.truncf %1 : vector<8x32xf32> to vector<8x32xbf16>
    %3 = vector.extract_strided_slice %0 {offsets = [0, 0], sizes = [32, 32], strides = [1, 1]} : vector<128x32xbf16> to vector<32x32xbf16>
    %cst = arith.constant dense<0.000000e+00> : vector<8x32xf32>
    %4 = tpu.matmul %2, %3, %cst {dimension_numbers = #tpu.dot_dimension_numbers<[1], [0], [0], [1], [0, 0, 1, 1], [], []>} : vector<8x32xbf16>, vector<32x32xbf16>, vector<8x32xf32> -> vector<8x32xf32>
    %c0_3 = arith.constant 0 : index
    %c0_4 = arith.constant 0 : index
    %5 = vector.load %arg2[%c0_3, %c0_4] : memref<8x32xf32, #tpu.memory_space<vmem>>, vector<8x32xf32>
    %6 = arith.truncf %5 : vector<8x32xf32> to vector<8x32xbf16>
    %7 = vector.extract_strided_slice %0 {offsets = [32, 0], sizes = [32, 32], strides = [1, 1]} : vector<128x32xbf16> to vector<32x32xbf16>
    %cst_5 = arith.constant dense<0.000000e+00> : vector<8x32xf32>
    %8 = tpu.matmul %6, %7, %cst_5 {dimension_numbers = #tpu.dot_dimension_numbers<[1], [0], [0], [1], [0, 0, 1, 1], [], []>} : vector<8x32xbf16>, vector<32x32xbf16>, vector<8x32xf32> -> vector<8x32xf32>
    %9 = arith.addf %4, %8 : vector<8x32xf32>
    %c0_6 = arith.constant 0 : index
    %c0_7 = arith.constant 0 : index
    %10 = vector.load %arg3[%c0_6, %c0_7] : memref<8x32xf32, #tpu.memory_space<vmem>>, vector<8x32xf32>
    %11 = arith.truncf %10 : vector<8x32xf32> to vector<8x32xbf16>
    %12 = vector.extract_strided_slice %0 {offsets = [64, 0], sizes = [32, 32], strides = [1, 1]} : vector<128x32xbf16> to vector<32x32xbf16>
    %cst_8 = arith.constant dense<0.000000e+00> : vector<8x32xf32>
    %13 = tpu.matmul %11, %12, %cst_8 {dimension_numbers = #tpu.dot_dimension_numbers<[1], [0], [0], [1], [0, 0, 1, 1], [], []>} : vector<8x32xbf16>, vector<32x32xbf16>, vector<8x32xf32> -> vector<8x32xf32>
    %c0_9 = arith.constant 0 : index
    %c0_10 = arith.constant 0 : index
    %14 = vector.load %arg4[%c0_9, %c0_10] : memref<8x32xf32, #tpu.memory_space<vmem>>, vector<8x32xf32>
    %15 = arith.truncf %14 : vector<8x32xf32> to vector<8x32xbf16>
    %16 = vector.extract_strided_slice %0 {offsets = [96, 0], sizes = [32, 32], strides = [1, 1]} : vector<128x32xbf16> to vector<32x32xbf16>
    %cst_11 = arith.constant dense<0.000000e+00> : vector<8x32xf32>
    %17 = tpu.matmul %15, %16, %cst_11 {dimension_numbers = #tpu.dot_dimension_numbers<[1], [0], [0], [1], [0, 0, 1, 1], [], []>} : vector<8x32xbf16>, vector<32x32xbf16>, vector<8x32xf32> -> vector<8x32xf32>
    %18 = arith.addf %13, %17 : vector<8x32xf32>
    %c0_12 = arith.constant 0 : index
    %c0_13 = arith.constant 0 : index
    %19 = vector.load %arg9[%c0_12, %c0_13] : memref<7x128xf32, #tpu.memory_space<vmem>>, vector<7x128xf32>
    %20 = vector.extract_strided_slice %19 {offsets = [0, 0], sizes = [1, 32], strides = [1, 1]} : vector<7x128xf32> to vector<1x32xf32>
    %21 = vector.extract_strided_slice %19 {offsets = [1, 0], sizes = [1, 32], strides = [1, 1]} : vector<7x128xf32> to vector<1x32xf32>
    %22 = vector.extract_strided_slice %19 {offsets = [2, 0], sizes = [1, 32], strides = [1, 1]} : vector<7x128xf32> to vector<1x32xf32>
    %23 = vector.broadcast %20 : vector<1x32xf32> to vector<8x32xf32>
    %24 = arith.addf %9, %23 : vector<8x32xf32>
    %cst_14 = arith.constant dense<0.000000e+00> : vector<8xf32>
    %25 = vector.multi_reduction <add>, %24, %cst_14 [1] : vector<8x32xf32> to vector<8xf32>
    %26 = vector.shape_cast %25 : vector<8xf32> to vector<8x1xf32>
    %cst_15 = arith.constant 3.200000e+01 : f32
    %27 = vector.broadcast %cst_15 : f32 to vector<8x1xf32>
    %28 = arith.divf %26, %27 : vector<8x1xf32>
    %29 = arith.mulf %24, %24 : vector<8x32xf32>
    %cst_16 = arith.constant dense<0.000000e+00> : vector<8xf32>
    %30 = vector.multi_reduction <add>, %29, %cst_16 [1] : vector<8x32xf32> to vector<8xf32>
    %31 = vector.shape_cast %30 : vector<8xf32> to vector<8x1xf32>
    %cst_17 = arith.constant 3.200000e+01 : f32
    %32 = vector.broadcast %cst_17 : f32 to vector<8x1xf32>
    %33 = arith.divf %31, %32 : vector<8x1xf32>
    %34 = arith.mulf %28, %28 : vector<8x1xf32>
    %35 = arith.subf %33, %34 : vector<8x1xf32>
    %cst_18 = arith.constant 0.000000e+00 : f32
    %36 = vector.broadcast %cst_18 : f32 to vector<8x1xf32>
    %37 = arith.maximumf %35, %36 : vector<8x1xf32>
    %38 = vector.broadcast %28 : vector<8x1xf32> to vector<8x32xf32>
    %39 = arith.subf %24, %38 : vector<8x32xf32>
    %cst_19 = arith.constant 9.99999974E-6 : f32
    %40 = vector.broadcast %cst_19 : f32 to vector<8x1xf32>
    %41 = arith.addf %37, %40 : vector<8x1xf32>
    %42 = math.rsqrt %41 : vector<8x1xf32>
    %43 = vector.broadcast %42 : vector<8x1xf32> to vector<8x32xf32>
    %44 = arith.mulf %39, %43 : vector<8x32xf32>
    %45 = vector.broadcast %21 : vector<1x32xf32> to vector<8x32xf32>
    %46 = arith.mulf %44, %45 : vector<8x32xf32>
    %47 = vector.broadcast %22 : vector<1x32xf32> to vector<8x32xf32>
    %48 = arith.addf %46, %47 : vector<8x32xf32>
    %cst_20 = arith.constant 0.000000e+00 : f32
    %49 = vector.broadcast %cst_20 : f32 to vector<8x32xf32>
    %50 = arith.maximumf %48, %49 : vector<8x32xf32>
    %51 = vector.extract_strided_slice %19 {offsets = [3, 0], sizes = [1, 32], strides = [1, 1]} : vector<7x128xf32> to vector<1x32xf32>
    %52 = vector.extract_strided_slice %19 {offsets = [4, 0], sizes = [1, 32], strides = [1, 1]} : vector<7x128xf32> to vector<1x32xf32>
    %53 = vector.extract_strided_slice %19 {offsets = [5, 0], sizes = [1, 32], strides = [1, 1]} : vector<7x128xf32> to vector<1x32xf32>
    %54 = vector.broadcast %51 : vector<1x32xf32> to vector<8x32xf32>
    %55 = arith.addf %18, %54 : vector<8x32xf32>
    %cst_21 = arith.constant dense<0.000000e+00> : vector<8xf32>
    %56 = vector.multi_reduction <add>, %55, %cst_21 [1] : vector<8x32xf32> to vector<8xf32>
    %57 = vector.shape_cast %56 : vector<8xf32> to vector<8x1xf32>
    %cst_22 = arith.constant 3.200000e+01 : f32
    %58 = vector.broadcast %cst_22 : f32 to vector<8x1xf32>
    %59 = arith.divf %57, %58 : vector<8x1xf32>
    %60 = arith.mulf %55, %55 : vector<8x32xf32>
    %cst_23 = arith.constant dense<0.000000e+00> : vector<8xf32>
    %61 = vector.multi_reduction <add>, %60, %cst_23 [1] : vector<8x32xf32> to vector<8xf32>
    %62 = vector.shape_cast %61 : vector<8xf32> to vector<8x1xf32>
    %cst_24 = arith.constant 3.200000e+01 : f32
    %63 = vector.broadcast %cst_24 : f32 to vector<8x1xf32>
    %64 = arith.divf %62, %63 : vector<8x1xf32>
    %65 = arith.mulf %59, %59 : vector<8x1xf32>
    %66 = arith.subf %64, %65 : vector<8x1xf32>
    %cst_25 = arith.constant 0.000000e+00 : f32
    %67 = vector.broadcast %cst_25 : f32 to vector<8x1xf32>
    %68 = arith.maximumf %66, %67 : vector<8x1xf32>
    %69 = vector.broadcast %59 : vector<8x1xf32> to vector<8x32xf32>
    %70 = arith.subf %55, %69 : vector<8x32xf32>
    %cst_26 = arith.constant 9.99999974E-6 : f32
    %71 = vector.broadcast %cst_26 : f32 to vector<8x1xf32>
    %72 = arith.addf %68, %71 : vector<8x1xf32>
    %73 = math.rsqrt %72 : vector<8x1xf32>
    %74 = vector.broadcast %73 : vector<8x1xf32> to vector<8x32xf32>
    %75 = arith.mulf %70, %74 : vector<8x32xf32>
    %76 = vector.broadcast %52 : vector<1x32xf32> to vector<8x32xf32>
    %77 = arith.mulf %75, %76 : vector<8x32xf32>
    %78 = vector.broadcast %53 : vector<1x32xf32> to vector<8x32xf32>
    %79 = arith.addf %77, %78 : vector<8x32xf32>
    %cst_27 = arith.constant 0.000000e+00 : f32
    %80 = vector.broadcast %cst_27 : f32 to vector<8x32xf32>
    %81 = arith.maximumf %79, %80 : vector<8x32xf32>
    %c0_28 = arith.constant 0 : index
    %c0_29 = arith.constant 0 : index
    %82 = vector.load %arg5[%c0_28, %c0_29] : memref<8x16xf32, #tpu.memory_space<vmem>>, vector<8x16xf32>
    %83 = arith.truncf %82 : vector<8x16xf32> to vector<8x16xbf16>
    %c0_30 = arith.constant 0 : index
    %c0_31 = arith.constant 0 : index
    %84 = vector.load %arg7[%c0_30, %c0_31] : memref<16x128xbf16, #tpu.memory_space<vmem>>, vector<16x128xbf16>
    %cst_32 = arith.constant dense<0.000000e+00> : vector<8x128xf32>
    %85 = tpu.matmul %83, %84, %cst_32 {dimension_numbers = #tpu.dot_dimension_numbers<[1], [0], [0], [1], [0, 0, 1, 1], [], []>} : vector<8x16xbf16>, vector<16x128xbf16>, vector<8x128xf32> -> vector<8x128xf32>
    %86 = arith.truncf %50 : vector<8x32xf32> to vector<8x32xbf16>
    %c0_33 = arith.constant 0 : index
    %c0_34 = arith.constant 0 : index
    %87 = vector.load %arg8[%c0_33, %c0_34] : memref<32x128xbf16, #tpu.memory_space<vmem>>, vector<32x128xbf16>
    %cst_35 = arith.constant dense<0.000000e+00> : vector<8x128xf32>
    %88 = tpu.matmul %86, %87, %cst_35 {dimension_numbers = #tpu.dot_dimension_numbers<[1], [0], [0], [1], [0, 0, 1, 1], [], []>} : vector<8x32xbf16>, vector<32x128xbf16>, vector<8x128xf32> -> vector<8x128xf32>
    %89 = arith.addf %85, %88 : vector<8x128xf32>
    %90 = vector.extract_strided_slice %19 {offsets = [6, 0], sizes = [1, 128], strides = [1, 1]} : vector<7x128xf32> to vector<1x128xf32>
    %91 = vector.broadcast %90 : vector<1x128xf32> to vector<8x128xf32>
    %92 = arith.addf %89, %91 : vector<8x128xf32>
    %93 = vector.extract_strided_slice %92 {offsets = [0, 0], sizes = [8, 96], strides = [1, 1]} : vector<8x128xf32> to vector<8x96xf32>
    %94 = arith.negf %93 : vector<8x96xf32>
    %95 = math.exp %94 : vector<8x96xf32>
    %cst_36 = arith.constant 1.000000e+00 : f32
    %96 = vector.broadcast %cst_36 : f32 to vector<8x96xf32>
    %97 = arith.addf %96, %95 : vector<8x96xf32>
    %98 = arith.divf %96, %97 : vector<8x96xf32>
    %99 = vector.extract_strided_slice %98 {offsets = [0, 0], sizes = [8, 32], strides = [1, 1]} : vector<8x96xf32> to vector<8x32xf32>
    %100 = vector.extract_strided_slice %98 {offsets = [0, 32], sizes = [8, 32], strides = [1, 1]} : vector<8x96xf32> to vector<8x32xf32>
    %101 = vector.extract_strided_slice %98 {offsets = [0, 64], sizes = [8, 32], strides = [1, 1]} : vector<8x96xf32> to vector<8x32xf32>
    %102 = vector.extract_strided_slice %92 {offsets = [0, 96], sizes = [8, 32], strides = [1, 1]} : vector<8x128xf32> to vector<8x32xf32>
    %103 = math.tanh %102 : vector<8x32xf32>
    %104 = arith.mulf %100, %81 : vector<8x32xf32>
    %105 = arith.mulf %99, %103 : vector<8x32xf32>
    %106 = arith.addf %104, %105 : vector<8x32xf32>
    %107 = math.tanh %106 : vector<8x32xf32>
    %108 = arith.mulf %101, %107 : vector<8x32xf32>
    %109 = tpu.concatenate %108, %106 in 1 : vector<8x32xf32>, vector<8x32xf32> -> vector<8x64xf32>
    %c0_37 = arith.constant 0 : index
    %c0_38 = arith.constant 0 : index
    %110 = vector.load %arg10[%c0_37, %c0_38] : memref<8x64xf32, #tpu.memory_space<vmem>>, vector<8x64xf32>
    tpu.vector_store %arg10[%c0_37, %c0_38], %109 {strides = array<i32>} : memref<8x64xf32, #tpu.memory_space<vmem>>, vector<8x64xf32>,
    return
  }
  func.func @transform_0(%arg0: i32) -> (i32, i32) {
    %c0_i32 = arith.constant 0 : i32
    %c0_i32_0 = arith.constant 0 : i32
    return %arg0, %c0_i32 : i32, i32
  }
  func.func @transform_1(%arg0: i32) -> (i32, i32) {
    %c0_i32 = arith.constant 0 : i32
    %c0_i32_0 = arith.constant 0 : i32
    return %arg0, %c0_i32 : i32, i32
  }
  func.func @transform_2(%arg0: i32) -> (i32, i32) {
    %c0_i32 = arith.constant 0 : i32
    %c0_i32_0 = arith.constant 0 : i32
    return %arg0, %c0_i32 : i32, i32
  }
  func.func @transform_3(%arg0: i32) -> (i32, i32) {
    %c0_i32 = arith.constant 0 : i32
    %c0_i32_0 = arith.constant 0 : i32
    return %arg0, %c0_i32 : i32, i32
  }
  func.func @transform_4(%arg0: i32) -> (i32, i32) {
    %c0_i32 = arith.constant 0 : i32
    %c0_i32_0 = arith.constant 0 : i32
    return %arg0, %c0_i32 : i32, i32
  }
  func.func @transform_5(%arg0: i32) -> (i32, i32) {
    %c0_i32 = arith.constant 0 : i32
    %c0_i32_0 = arith.constant 0 : i32
    %c0_i32_1 = arith.constant 0 : i32
    return %c0_i32, %c0_i32_0 : i32, i32
  }
  func.func @transform_6(%arg0: i32) -> (i32, i32) {
    %c0_i32 = arith.constant 0 : i32
    %c0_i32_0 = arith.constant 0 : i32
    %c0_i32_1 = arith.constant 0 : i32
    return %c0_i32, %c0_i32_0 : i32, i32
  }
  func.func @transform_7(%arg0: i32) -> (i32, i32) {
    %c0_i32 = arith.constant 0 : i32
    %c0_i32_0 = arith.constant 0 : i32
    %c0_i32_1 = arith.constant 0 : i32
    return %c0_i32, %c0_i32_0 : i32, i32
  }
  func.func @transform_8(%arg0: i32) -> (i32, i32) {
    %c0_i32 = arith.constant 0 : i32
    %c0_i32_0 = arith.constant 0 : i32
    %c0_i32_1 = arith.constant 0 : i32
    return %c0_i32, %c0_i32_0 : i32, i32
  }
  func.func @transform_9(%arg0: i32) -> (i32, i32) {
    %c0_i32 = arith.constant 0 : i32
    %c0_i32_0 = arith.constant 0 : i32
    return %arg0, %c0_i32 : i32, i32
  }
}

</mosaic_0001>

<llo_original>
// kernel: lattice_rnn_cell_forward.1
$region0: #{lattice_rnn_cell_forward.1}
  #allocation0 [shape = 'u32[]', space=smem, size = 0x4, offset = 0x4, fixed_abs, tag = 'smem constant byte address 0x4 - core index']
  #allocation1 [shape = 'u32[144,128]{1,0:T(1,128)}', space=vmem, size = 0x12000, scoped, tag = 'internal scratch']
  %s0 = inlined_call_operand.vmem [shape: f32[8,32], index: 0, kind: input, shape index: {}]
  %s1 = inlined_call_operand.vmem [shape: f32[8,32], index: 1, kind: input, shape index: {}]
  %s2 = inlined_call_operand.vmem [shape: f32[8,32], index: 2, kind: input, shape index: {}]
  %s3 = inlined_call_operand.vmem [shape: f32[8,32], index: 3, kind: input, shape index: {}]
  %s4 = inlined_call_operand.vmem [shape: f32[8,16], index: 4, kind: input, shape index: {}]
  %s5 = inlined_call_operand.vmem [shape: bf16[128,32], index: 5, kind: input, shape index: {}]
  %s6 = inlined_call_operand.vmem [shape: bf16[16,128], index: 6, kind: input, shape index: {}]
  %s7 = inlined_call_operand.vmem [shape: bf16[32,128], index: 7, kind: input, shape index: {}]
  %s8 = inlined_call_operand.vmem [shape: f32[7,128], index: 8, kind: input, shape index: {}]
  %s9 = inlined_call_operand.vmem [shape: f32[8,64], index: 9, kind: output, shape index: {}]
  %s10 = sld [smem:[#allocation0]]
  $region46: #{lattice_rnn_cell_forward.1} parent=0
    _
  %s12 = ssub.s32 1, %s10
  %s13 = scalar_select 0, %s12, %s10
  // Predicated region
  $region2: #{lattice_rnn_cell_forward.1} parent=0 // pred_check
    _
  $region3: #{lattice_rnn_cell_forward.1} parent=0 // pred_check_branch
    %15 = sbr.rel (0) target = $region5
  $region4: #{lattice_rnn_cell_forward.1} parent=0 // pred_region
    _
  $region5: #{lattice_rnn_cell_forward.1} parent=0 // pred_fallthru
    _
  // Predicated region
  $region6: #{lattice_rnn_cell_forward.1} parent=0 // pred_check
    _
  $region7: #{lattice_rnn_cell_forward.1} parent=0 // pred_check_branch
    %17 = sbr.rel (0) target = $region9
  $region8: #{lattice_rnn_cell_forward.1} parent=0 // pred_region
    _
  $region9: #{lattice_rnn_cell_forward.1} parent=0 // pred_fallthru
    _
  // Predicated region
  $region10: #{lattice_rnn_cell_forward.1} parent=0 // pred_check
    _
  $region11: #{lattice_rnn_cell_forward.1} parent=0 // pred_check_branch
    %19 = sbr.rel (0) target = $region13
  $region12: #{lattice_rnn_cell_forward.1} parent=0 // pred_region
    _
  $region13: #{lattice_rnn_cell_forward.1} parent=0 // pred_fallthru
    _
  // Predicated region
  $region14: #{lattice_rnn_cell_forward.1} parent=0 // pred_check
    _
  $region15: #{lattice_rnn_cell_forward.1} parent=0 // pred_check_branch
    %21 = sbr.rel (0) target = $region17
  $region16: #{lattice_rnn_cell_forward.1} parent=0 // pred_region
    _
  $region17: #{lattice_rnn_cell_forward.1} parent=0 // pred_fallthru
    _
  // Predicated region
  $region18: #{lattice_rnn_cell_forward.1} parent=0 // pred_check
    _
  $region19: #{lattice_rnn_cell_forward.1} parent=0 // pred_check_branch
    %23 = sbr.rel (0) target = $region21
  $region20: #{lattice_rnn_cell_forward.1} parent=0 // pred_region
    _
  $region21: #{lattice_rnn_cell_forward.1} parent=0 // pred_fallthru
    _
  // Predicated region
  $region22: #{lattice_rnn_cell_forward.1} parent=0 // pred_check
    _
  $region23: #{lattice_rnn_cell_forward.1} parent=0 // pred_check_branch
    %25 = sbr.rel (0) target = $region25
  $region24: #{lattice_rnn_cell_forward.1} parent=0 // pred_region
    _
  $region25: #{lattice_rnn_cell_forward.1} parent=0 // pred_fallthru
    _
  // Predicated region
  $region26: #{lattice_rnn_cell_forward.1} parent=0 // pred_check
    _
  $region27: #{lattice_rnn_cell_forward.1} parent=0 // pred_check_branch
    %27 = sbr.rel (0) target = $region29
  $region28: #{lattice_rnn_cell_forward.1} parent=0 // pred_region
    _
  $region29: #{lattice_rnn_cell_forward.1} parent=0 // pred_fallthru
    _
  // Predicated region
  $region30: #{lattice_rnn_cell_forward.1} parent=0 // pred_check
    _
  $region31: #{lattice_rnn_cell_forward.1} parent=0 // pred_check_branch
    %29 = sbr.rel (0) target = $region33
  $region32: #{lattice_rnn_cell_forward.1} parent=0 // pred_region
    _
  $region33: #{lattice_rnn_cell_forward.1} parent=0 // pred_fallthru
    _
  // Predicated region
  $region34: #{lattice_rnn_cell_forward.1} parent=0 // pred_check
    _
  $region35: #{lattice_rnn_cell_forward.1} parent=0 // pred_check_branch
    %31 = sbr.rel (0) target = $region37
  $region36: #{lattice_rnn_cell_forward.1} parent=0 // pred_region
    _
  $region37: #{lattice_rnn_cell_forward.1} parent=0 // pred_fallthru
    _
  %v33 = vld [vmem:[%s5] sm:$0xf]
  %v34 = vld [vmem:[%s5 + $0x4] sm:$0xf]
  %v35 = vld [vmem:[%s5 + $0x8] sm:$0xf]
  %v36 = vld [vmem:[%s5 + $0xc] sm:$0xf]
  %v37 = vld [vmem:[%s5 + $0x10] sm:$0xf]
  %v38 = vld [vmem:[%s5 + $0x14] sm:$0xf]
  %v39 = vld [vmem:[%s5 + $0x18] sm:$0xf]
  %v40 = vld [vmem:[%s5 + $0x1c] sm:$0xf]
  %v41 = vld [vmem:[%s5 + $0x20] sm:$0xf]
  %v42 = vld [vmem:[%s5 + $0x24] sm:$0xf]
  %v43 = vld [vmem:[%s5 + $0x28] sm:$0xf]
  %v44 = vld [vmem:[%s5 + $0x2c] sm:$0xf]
  %v45 = vld [vmem:[%s5 + $0x30] sm:$0xf]
  %v46 = vld [vmem:[%s5 + $0x34] sm:$0xf]
  %v47 = vld [vmem:[%s5 + $0x38] sm:$0xf]
  %v48 = vld [vmem:[%s5 + $0x3c] sm:$0xf]
  %v49 = vld [vmem:[%s0] sm:$0xff]
  %v50 = vpack.c.bf16 %v49, %v49
  %v51 = vld [vmem:[%s1] sm:$0xff]
  %v52 = vpack.c.bf16 %v51, %v51
  %v57 = vunpack.c.l.b16 %v37
  %v58 = vunpack.c.l.b16 %v38
  %v59 = vunpack.c.l.b16 %v39
  %v60 = vunpack.c.l.b16 %v40
  %v61 = vpack.c.b16 %v58, %v57
  %v62 = vpack.c.b16 %v60, %v59
  %vm65 = vcmask 261120
  %v67 = vsel %vm65, %v52, 0
  %69 = vmatprep.subr.bf16.mxu0 0
  %70 = vmatpush1.bf16.msra.mxu0 %v61
  %71 = vmatprep.subr.bf16.mxu0 0
  %72 = vmatpush1.bf16.msra.mxu0 %v62
  %73 = vmatprep.subr.bf16.mxu0 0
  %74 = vmatpush1.bf16.msra.mxu0 0
  %75 = vmatprep.subr.bf16.mxu0 0
  %76 = vmatpush1.bf16.msra.mxu0 0
  %77 = vmatprep.subr.bf16.mxu0 0
  %78 = vmatpush1.bf16.msra.mxu0 0
  %79 = vmatprep.subr.bf16.mxu0 0
  %80 = vmatpush1.bf16.msra.mxu0 0
  %81 = vmatprep.subr.bf16.mxu0 0
  %82 = vmatpush1.bf16.msra.mxu0 0
  %83 = vmatprep.subr.bf16.mxu0 0
  %84 = vmatpush1.bf16.msra.mxu0 0
  %85 = vmatprep.subr.bf16.mxu0 0
  %86 = vmatpush1.bf16.msra.mxu0 0
  %87 = vmatprep.subr.bf16.mxu0 0
  %88 = vmatpush1.bf16.msra.mxu0 0
  %89 = vmatprep.subr.bf16.mxu0 0
  %90 = vmatpush1.bf16.msra.mxu0 0
  %91 = vmatprep.subr.bf16.mxu0 0
  %92 = vmatpush1.bf16.msra.mxu0 0
  %93 = vmatprep.subr.bf16.mxu0 0
  %94 = vmatpush1.bf16.msra.mxu0 0
  %95 = vmatprep.subr.bf16.mxu0 0
  %96 = vmatpush1.bf16.msra.mxu0 0
  %97 = vmatprep.subr.bf16.mxu0 0
  %98 = vmatpush1.bf16.msra.mxu0 0
  %99 = vmatprep.subr.bf16.mxu0 0
  %100 = vmatpush1.bf16.msra.mxu0 0
  %101 = vmatprep.mubr.bf16.mxu0 0
  %102 = vmatmul.mubr.bf16.gmra.mrb[0].mxu0 %v67
  %v103 = vpop.f32.mrb[0].mxu0
  %v104 = vadd.f32 0.0, %v103
  %v105 = vpop.f32.mrb[0].mxu0
  %v106 = vpop.f32.mrb[0].mxu0
  %v107 = vpop.f32.mrb[0].mxu0
  %108 = vdwg.mxu0
  %v113 = vunpack.c.l.b16 %v33
  %v114 = vunpack.c.l.b16 %v34
  %v115 = vunpack.c.l.b16 %v35
  %v116 = vunpack.c.l.b16 %v36
  %v117 = vpack.c.b16 %v114, %v113
  %v118 = vpack.c.b16 %v116, %v115
  %v122 = vsel %vm65, %v50, 0
  %124 = vmatprep.subr.bf16.mxu0 0
  %125 = vmatpush1.bf16.msra.mxu0 %v117
  %126 = vmatprep.subr.bf16.mxu0 0
  %127 = vmatpush1.bf16.msra.mxu0 %v118
  %128 = vmatprep.subr.bf16.mxu0 0
  %129 = vmatpush1.bf16.msra.mxu0 0
  %130 = vmatprep.subr.bf16.mxu0 0
  %131 = vmatpush1.bf16.msra.mxu0 0
  %132 = vmatprep.subr.bf16.mxu0 0
  %133 = vmatpush1.bf16.msra.mxu0 0
  %134 = vmatprep.subr.bf16.mxu0 0
  %135 = vmatpush1.bf16.msra.mxu0 0
  %136 = vmatprep.subr.bf16.mxu0 0
  %137 = vmatpush1.bf16.msra.mxu0 0
  %138 = vmatprep.subr.bf16.mxu0 0
  %139 = vmatpush1.bf16.msra.mxu0 0
  %140 = vmatprep.subr.bf16.mxu0 0
  %141 = vmatpush1.bf16.msra.mxu0 0
  %142 = vmatprep.subr.bf16.mxu0 0
  %143 = vmatpush1.bf16.msra.mxu0 0
  %144 = vmatprep.subr.bf16.mxu0 0
  %145 = vmatpush1.bf16.msra.mxu0 0
  %146 = vmatprep.subr.bf16.mxu0 0
  %147 = vmatpush1.bf16.msra.mxu0 0
  %148 = vmatprep.subr.bf16.mxu0 0
  %149 = vmatpush1.bf16.msra.mxu0 0
  %150 = vmatprep.subr.bf16.mxu0 0
  %151 = vmatpush1.bf16.msra.mxu0 0
  %152 = vmatprep.subr.bf16.mxu0 0
  %153 = vmatpush1.bf16.msra.mxu0 0
  %154 = vmatprep.subr.bf16.mxu0 0
  %155 = vmatpush1.bf16.msra.mxu0 0
  %156 = vmatprep.mubr.bf16.mxu0 0
  %157 = vmatmul.mubr.bf16.gmra.mrb[0].mxu0 %v122
  %v158 = vpop.f32.mrb[0].mxu0
  %v159 = vadd.f32 %v104, %v158
  %v160 = vpop.f32.mrb[0].mxu0
  %v161 = vpop.f32.mrb[0].mxu0
  %v162 = vpop.f32.mrb[0].mxu0
  %163 = vdwg.mxu0
  %v164 = vld [vmem:[%s2] sm:$0xff]
  %v165 = vpack.c.bf16 %v164, %v164
  %v166 = vld [vmem:[%s3] sm:$0xff]
  %v167 = vpack.c.bf16 %v166, %v166
  %v172 = vunpack.c.l.b16 %v45
  %v173 = vunpack.c.l.b16 %v46
  %v174 = vunpack.c.l.b16 %v47
  %v175 = vunpack.c.l.b16 %v48
  %v176 = vpack.c.b16 %v173, %v172
  %v177 = vpack.c.b16 %v175, %v174
  %v181 = vsel %vm65, %v167, 0
  %183 = vmatprep.subr.bf16.mxu0 0
  %184 = vmatpush1.bf16.msra.mxu0 %v176
  %185 = vmatprep.subr.bf16.mxu0 0
  %186 = vmatpush1.bf16.msra.mxu0 %v177
  %187 = vmatprep.subr.bf16.mxu0 0
  %188 = vmatpush1.bf16.msra.mxu0 0
  %189 = vmatprep.subr.bf16.mxu0 0
  %190 = vmatpush1.bf16.msra.mxu0 0
  %191 = vmatprep.subr.bf16.mxu0 0
  %192 = vmatpush1.bf16.msra.mxu0 0
  %193 = vmatprep.subr.bf16.mxu0 0
  %194 = vmatpush1.bf16.msra.mxu0 0
  %195 = vmatprep.subr.bf16.mxu0 0
  %196 = vmatpush1.bf16.msra.mxu0 0
  %197 = vmatprep.subr.bf16.mxu0 0
  %198 = vmatpush1.bf16.msra.mxu0 0
  %199 = vmatprep.subr.bf16.mxu0 0
  %200 = vmatpush1.bf16.msra.mxu0 0
  %201 = vmatprep.subr.bf16.mxu0 0
  %202 = vmatpush1.bf16.msra.mxu0 0
  %203 = vmatprep.subr.bf16.mxu0 0
  %204 = vmatpush1.bf16.msra.mxu0 0
  %205 = vmatprep.subr.bf16.mxu0 0
  %206 = vmatpush1.bf16.msra.mxu0 0
  %207 = vmatprep.subr.bf16.mxu0 0
  %208 = vmatpush1.bf16.msra.mxu0 0
  %209 = vmatprep.subr.bf16.mxu0 0
  %210 = vmatpush1.bf16.msra.mxu0 0
  %211 = vmatprep.subr.bf16.mxu0 0
  %212 = vmatpush1.bf16.msra.mxu0 0
  %213 = vmatprep.subr.bf16.mxu0 0
  %214 = vmatpush1.bf16.msra.mxu0 0
  %215 = vmatprep.mubr.bf16.mxu0 0
  %216 = vmatmul.mubr.bf16.gmra.mrb[0].mxu0 %v181
  %v217 = vpop.f32.mrb[0].mxu0
  %v218 = vadd.f32 0.0, %v217
  %v219 = vpop.f32.mrb[0].mxu0
  %v220 = vpop.f32.mrb[0].mxu0
  %v221 = vpop.f32.mrb[0].mxu0
  %222 = vdwg.mxu0
  %v227 = vunpack.c.l.b16 %v41
  %v228 = vunpack.c.l.b16 %v42
  %v229 = vunpack.c.l.b16 %v43
  %v230 = vunpack.c.l.b16 %v44
  %v231 = vpack.c.b16 %v228, %v227
  %v232 = vpack.c.b16 %v230, %v229
  %v236 = vsel %vm65, %v165, 0
  %238 = vmatprep.subr.bf16.mxu0 0
  %239 = vmatpush1.bf16.msra.mxu0 %v231
  %240 = vmatprep.subr.bf16.mxu0 0
  %241 = vmatpush1.bf16.msra.mxu0 %v232
  %242 = vmatprep.subr.bf16.mxu0 0
  %243 = vmatpush1.bf16.msra.mxu0 0
  %244 = vmatprep.subr.bf16.mxu0 0
  %245 = vmatpush1.bf16.msra.mxu0 0
  %246 = vmatprep.subr.bf16.mxu0 0
  %247 = vmatpush1.bf16.msra.mxu0 0
  %248 = vmatprep.subr.bf16.mxu0 0
  %249 = vmatpush1.bf16.msra.mxu0 0
  %250 = vmatprep.subr.bf16.mxu0 0
  %251 = vmatpush1.bf16.msra.mxu0 0
  %252 = vmatprep.subr.bf16.mxu0 0
  %253 = vmatpush1.bf16.msra.mxu0 0
  %254 = vmatprep.subr.bf16.mxu0 0
  %255 = vmatpush1.bf16.msra.mxu0 0
  %256 = vmatprep.subr.bf16.mxu0 0
  %257 = vmatpush1.bf16.msra.mxu0 0
  %258 = vmatprep.subr.bf16.mxu0 0
  %259 = vmatpush1.bf16.msra.mxu0 0
  %260 = vmatprep.subr.bf16.mxu0 0
  %261 = vmatpush1.bf16.msra.mxu0 0
  %262 = vmatprep.subr.bf16.mxu0 0
  %263 = vmatpush1.bf16.msra.mxu0 0
  %264 = vmatprep.subr.bf16.mxu0 0
  %265 = vmatpush1.bf16.msra.mxu0 0
  %266 = vmatprep.subr.bf16.mxu0 0
  %267 = vmatpush1.bf16.msra.mxu0 0
  %268 = vmatprep.subr.bf16.mxu0 0
  %269 = vmatpush1.bf16.msra.mxu0 0
  %270 = vmatprep.mubr.bf16.mxu0 0
  %271 = vmatmul.mubr.bf16.gmra.mrb[0].mxu0 %v236
  %v272 = vpop.f32.mrb[0].mxu0
  %v273 = vadd.f32 %v218, %v272
  %v274 = vpop.f32.mrb[0].mxu0
  %v275 = vpop.f32.mrb[0].mxu0
  %v276 = vpop.f32.mrb[0].mxu0
  %277 = vdwg.mxu0
  %v278 = vld [vmem:[%s8] sm:$0x7f]
  %v279 = vlaneseq
  %v280 = vshrl.u32 %v279, 7
  %v281 = vsub.s32 0, %v280
  %v282 = vrot.slane %v278, %v281
  %v283 = vadd.f32 %v159, %v282
  %v284 = vsel %vm65, %v283, 0.0
  %285 = vadd.xlane.f32.xlu0 %v284
  %v286 = vpop.xlane.xlu0 %285
  %v287 = vrcp.pop 32.0
  %v288 = vmul.f32 %v286, %v287
  %v289 = vmul.f32 %v283, %v283
  %v290 = vsel %vm65, %v289, 0.0
  %291 = vadd.xlane.f32.xlu0 %v290
  %v292 = vpop.xlane.xlu0 %291
  %v293 = vmul.f32 %v292, %v287
  %v294 = vmul.f32 %v288, %v288
  %v295 = vsub.f32 %v293, %v294
  %v296 = vmax.f32 %v295, 0.0
  %v297 = vsub.f32 %v283, %v288
  %v298 = vadd.f32 %v296, 1e-05
  %v299 = vrsqrt.pop %v298
  %v300 = vmul.f32 %v297, %v299
  %v301 = vlaneseq
  %v302 = vshrl.u32 %v301, 7
  %v303 = vsub.s32 1, %v302
  %v304 = vrot.slane %v278, %v303
  %v305 = vmul.f32 %v300, %v304
  %v306 = vlaneseq
  %v307 = vshrl.u32 %v306, 7
  %v308 = vsub.s32 2, %v307
  %v309 = vrot.slane %v278, %v308
  %v310 = vadd.f32 %v305, %v309
  %v311 = vmax.f32 %v310, 0.0
  %v312 = vlaneseq
  %v313 = vshrl.u32 %v312, 7
  %v314 = vsub.s32 3, %v313
  %v315 = vrot.slane %v278, %v314
  %v316 = vadd.f32 %v273, %v315
  %v317 = vsel %vm65, %v316, 0.0
  %318 = vadd.xlane.f32.xlu0 %v317
  %v319 = vpop.xlane.xlu0 %318
  %v320 = vmul.f32 %v319, %v287
  %v321 = vmul.f32 %v316, %v316
  %v322 = vsel %vm65, %v321, 0.0
  %323 = vadd.xlane.f32.xlu0 %v322
  %v324 = vpop.xlane.xlu0 %323
  %v325 = vmul.f32 %v324, %v287
  %v326 = vmul.f32 %v320, %v320
  %v327 = vsub.f32 %v325, %v326
  %v328 = vmax.f32 %v327, 0.0
  %v329 = vsub.f32 %v316, %v320
  %v330 = vadd.f32 %v328, 1e-05
  %v331 = vrsqrt.pop %v330
  %v332 = vmul.f32 %v329, %v331
  %v333 = vlaneseq
  %v334 = vshrl.u32 %v333, 7
  %v335 = vsub.s32 4, %v334
  %v336 = vrot.slane %v278, %v335
  %v337 = vmul.f32 %v332, %v336
  %v338 = vlaneseq
  %v339 = vshrl.u32 %v338, 7
  %v340 = vsub.s32 5, %v339
  %v341 = vrot.slane %v278, %v340
  %v342 = vadd.f32 %v337, %v341
  %v343 = vmax.f32 %v342, 0.0
  %v344 = vld [vmem:[%s4] sm:$0xff]
  %v345 = vpack.c.bf16 %v344, %v344
  %v346 = vld [vmem:[%s6] sm:$0xf]
  %v347 = vld [vmem:[%s6 + $0x4] sm:$0xf]
  %v348 = vpack.c.bf16 %v311, %v311
  %v349 = vld [vmem:[%s7] sm:$0xf]
  %v350 = vld [vmem:[%s7 + $0x4] sm:$0xf]
  %v351 = vld [vmem:[%s7 + $0x8] sm:$0xf]
  %v352 = vld [vmem:[%s7 + $0xc] sm:$0xf]
  %v357 = vunpack.c.l.b16 %v349
  %v358 = vunpack.c.l.b16 %v350
  %v359 = vunpack.c.l.b16 %v351
  %v360 = vunpack.c.l.b16 %v352
  %v361 = vpack.c.b16 %v358, %v357
  %v362 = vpack.c.b16 %v360, %v359
  %v366 = vsel %vm65, %v348, 0
  %368 = vmatprep.subr.bf16.mxu0 0
  %369 = vmatpush1.bf16.msra.mxu0 %v361
  %370 = vmatprep.subr.bf16.mxu0 0
  %371 = vmatpush1.bf16.msra.mxu0 %v362
  %372 = vmatprep.subr.bf16.mxu0 0
  %373 = vmatpush1.bf16.msra.mxu0 0
  %374 = vmatprep.subr.bf16.mxu0 0
  %375 = vmatpush1.bf16.msra.mxu0 0
  %376 = vmatprep.subr.bf16.mxu0 0
  %377 = vmatpush1.bf16.msra.mxu0 0
  %378 = vmatprep.subr.bf16.mxu0 0
  %379 = vmatpush1.bf16.msra.mxu0 0
  %380 = vmatprep.subr.bf16.mxu0 0
  %381 = vmatpush1.bf16.msra.mxu0 0
  %382 = vmatprep.subr.bf16.mxu0 0
  %383 = vmatpush1.bf16.msra.mxu0 0
  %384 = vmatprep.subr.bf16.mxu0 0
  %385 = vmatpush1.bf16.msra.mxu0 0
  %386 = vmatprep.subr.bf16.mxu0 0
  %387 = vmatpush1.bf16.msra.mxu0 0
  %388 = vmatprep.subr.bf16.mxu0 0
  %389 = vmatpush1.bf16.msra.mxu0 0
  %390 = vmatprep.subr.bf16.mxu0 0
  %391 = vmatpush1.bf16.msra.mxu0 0
  %392 = vmatprep.subr.bf16.mxu0 0
  %393 = vmatpush1.bf16.msra.mxu0 0
  %394 = vmatprep.subr.bf16.mxu0 0
  %395 = vmatpush1.bf16.msra.mxu0 0
  %396 = vmatprep.subr.bf16.mxu0 0
  %397 = vmatpush1.bf16.msra.mxu0 0
  %398 = vmatprep.subr.bf16.mxu0 0
  %399 = vmatpush1.bf16.msra.mxu0 0
  %400 = vmatprep.mubr.bf16.mxu0 0
  %401 = vmatmul.mubr.bf16.gmra.mrb[0].mxu0 %v366
  %v402 = vpop.f32.mrb[0].mxu0
  %v403 = vadd.f32 0.0, %v402
  %v404 = vpop.f32.mrb[0].mxu0
  %v405 = vpop.f32.mrb[0].mxu0
  %v406 = vpop.f32.mrb[0].mxu0
  %407 = vdwg.mxu0
  %v410 = vunpack.c.l.b16 %v346
  %v411 = vunpack.c.l.b16 %v347
  %v412 = vpack.c.b16 %v411, %v410
  %vm414 = vcmask 130048
  %v416 = vsel %vm414, %v345, 0
  %418 = vmatprep.subr.bf16.mxu0 0
  %419 = vmatpush1.bf16.msra.mxu0 %v412
  %420 = vmatprep.subr.bf16.mxu0 0
  %421 = vmatpush1.bf16.msra.mxu0 0
  %422 = vmatprep.subr.bf16.mxu0 0
  %423 = vmatpush1.bf16.msra.mxu0 0
  %424 = vmatprep.subr.bf16.mxu0 0
  %425 = vmatpush1.bf16.msra.mxu0 0
  %426 = vmatprep.subr.bf16.mxu0 0
  %427 = vmatpush1.bf16.msra.mxu0 0
  %428 = vmatprep.subr.bf16.mxu0 0
  %429 = vmatpush1.bf16.msra.mxu0 0
  %430 = vmatprep.subr.bf16.mxu0 0
  %431 = vmatpush1.bf16.msra.mxu0 0
  %432 = vmatprep.subr.bf16.mxu0 0
  %433 = vmatpush1.bf16.msra.mxu0 0
  %434 = vmatprep.subr.bf16.mxu0 0
  %435 = vmatpush1.bf16.msra.mxu0 0
  %436 = vmatprep.subr.bf16.mxu0 0
  %437 = vmatpush1.bf16.msra.mxu0 0
  %438 = vmatprep.subr.bf16.mxu0 0
  %439 = vmatpush1.bf16.msra.mxu0 0
  %440 = vmatprep.subr.bf16.mxu0 0
  %441 = vmatpush1.bf16.msra.mxu0 0
  %442 = vmatprep.subr.bf16.mxu0 0
  %443 = vmatpush1.bf16.msra.mxu0 0
  %444 = vmatprep.subr.bf16.mxu0 0
  %445 = vmatpush1.bf16.msra.mxu0 0
  %446 = vmatprep.subr.bf16.mxu0 0
  %447 = vmatpush1.bf16.msra.mxu0 0
  %448 = vmatprep.subr.bf16.mxu0 0
  %449 = vmatpush1.bf16.msra.mxu0 0
  %450 = vmatprep.mubr.bf16.mxu0 0
  %451 = vmatmul.mubr.bf16.gmra.mrb[0].mxu0 %v416
  %v452 = vpop.f32.mrb[0].mxu0
  %v453 = vadd.f32 %v403, %v452
  %v454 = vpop.f32.mrb[0].mxu0
  %v455 = vpop.f32.mrb[0].mxu0
  %v456 = vpop.f32.mrb[0].mxu0
  %457 = vdwg.mxu0
  %v458 = vlaneseq
  %v459 = vshrl.u32 %v458, 7
  %v460 = vsub.s32 6, %v459
  %v461 = vrot.slane %v278, %v460
  %v462 = vadd.f32 %v453, %v461
  %v463 = vxor.u32 %v462, 2147483648
  %v464 = vmul.f32 %v463, 1.442695
  %v465 = vpow.pop %v464
  %v466 = vadd.f32 %v465, 1.0
  %v467 = vrcp.pop %v466
  %v468 = vmul.f32 1.0, %v467
  %v469 = vtanh.pop %v462
  %471 = vrot.lane.b32.xlu0 %v343, 32
  %v472 = vpop.permute.xlu0 %471
  %v474 = vmul.f32 %v468, %v472
  %476 = vrot.lane.b32.xlu0 %v469, 32
  %v477 = vpop.permute.xlu0 %476
  %v479 = vmul.f32 %v468, %v477
  %481 = vrot.lane.b32.xlu0 %v479, 32
  %v482 = vpop.permute.xlu0 %481
  %v484 = vadd.f32 %v474, %v482
  %v485 = vtanh.pop %v484
  %487 = vrot.lane.b32.xlu0 %v485, 32
  %v488 = vpop.permute.xlu0 %487
  %v490 = vmul.f32 %v468, %v488
  %492 = vrot.lane.b32.xlu0 %v490, 64
  %v493 = vpop.permute.xlu0 %492
  %v495 = vsel %vm65, %v493, %v484
  %vm496 = vcmask 523264
  %497 = vst.msk [vmem:[%s9] sm:$0xff] %vm496, %v495
  // Predicated region
  $region38: #{lattice_rnn_cell_forward.1} parent=0 // pred_check
    _
  $region39: #{lattice_rnn_cell_forward.1} parent=0 // pred_check_branch
    %499 = sbr.rel (0) target = $region41
  $region40: #{lattice_rnn_cell_forward.1} parent=0 // pred_region
    _
  $region41: #{lattice_rnn_cell_forward.1} parent=0 // pred_fallthru
    _
  // Predicated region
  $region42: #{lattice_rnn_cell_forward.1} parent=0 // pred_check
    _
  $region43: #{lattice_rnn_cell_forward.1} parent=0 // pred_check_branch
    %501 = sbr.rel (0) target = $region45
  $region44: #{lattice_rnn_cell_forward.1} parent=0 // pred_region
    _
  $region45: #{lattice_rnn_cell_forward.1} parent=0 // pred_fallthru
    _

</llo_original>
